<compile_context>
chip_gen: v6e
topology: v6e:2x2x1
jax: 0.10.0
libtpu: 0.0.40
codegen_flags: <defaults>
</compile_context>

<pallas_src>
import functools

import jax
import jax.numpy as jnp
from jax.experimental import pallas as pl
from jax.experimental.pallas import tpu as pltpu

_BN_EPS = 1e-5

# pltpu.roll convention (True => pltpu.roll(x, k)[..., i] == x[..., (i - k) % n], i.e.
# numpy/jnp.roll semantics). Probed once at runtime in __main__ to be convention-proof.
_ROLL_IS_NUMPY_CONVENTION = True

_OFFSETS_3X3 = tuple((dh, dw) for dh in (-1, 0, 1) for dw in (-1, 0, 1))

_MB_PARAM_NAMES = (
    "w1a", "w1b", "b1", "kdw", "bdw",
    "se_w1", "se_b1", "se_w2", "se_b2",
    "w3", "b3", "w4", "b4", "w5a", "w5b", "b5",
)


def _detect_roll_convention():
    """Tiny probe kernel: does pltpu.roll follow jnp.roll's shift direction?"""
    def k(x_ref, o_ref):
        o_ref[...] = pltpu.roll(x_ref[...], 1, axis=1)

    x = jnp.arange(8 * 128, dtype=jnp.float32).reshape(8, 128)
    y = pl.pallas_call(k, out_shape=jax.ShapeDtypeStruct((8, 128), jnp.float32))(x)
    return bool(y[0, 1] == x[0, 0])


def _sigmoid(y):
    return 1.0 / (1.0 + jnp.exp(-y))


def _silu(y):
    return y * _sigmoid(y)


def _lane_shift(x, s):
    """Return y with y[:, m] = x[:, m + s] (cyclic wrap; wrapped lanes masked by caller)."""
    if s == 0:
        return x
    m = x.shape[-1]
    amount = (-s) % m if _ROLL_IS_NUMPY_CONVENTION else s % m
    return pltpu.roll(x, amount, axis=1)


def _stencil_mask(h, w):
    """(9, h*w) validity mask for a 3x3 / pad=1 stencil over row-major flat pixels."""
    hh = jnp.arange(h).reshape(h, 1)
    ww = jnp.arange(w).reshape(1, w)
    rows = []
    for dh, dw in _OFFSETS_3X3:
        valid = (hh + dh >= 0) & (hh + dh < h) & (ww + dw >= 0) & (ww + dw < w)
        rows.append(valid.astype(jnp.float32).reshape(1, h * w))
    return jnp.concatenate(rows, axis=0)


def _masked_tap(x, mask, t, dh, dw, width):
    """One lane-shifted copy of x, zeroed where the 3x3/pad=1 tap falls outside the image."""
    tap = _lane_shift(x, dh * width + dw)
    if (dh, dw) != (0, 0):          # centre tap: mask row is all ones -> skip the multiply
        tap = tap * mask[t:t + 1, :]
    return tap


# ------------------------------------------------------------------
# Fused MBConv body (values only; everything lives in vregs/VMEM)
# ------------------------------------------------------------------
def _mbconv_body(xa, xb, mask, p, width):
    """xa, xb: (Ca, M), (Cb, M) channel-concat halves (channel-major). Returns (Cout, M)."""
    f32 = jnp.float32
    # conv1 (1x1, BN folded into weight rows) + SiLU; input concat folded into split weights.
    t = _silu(jnp.dot(p["w1a"], xa, preferred_element_type=f32)
              + jnp.dot(p["w1b"], xb, preferred_element_type=f32) + p["b1"])
    x1 = t
    # conv2 (depthwise 3x3, pad=1, BN folded) + SiLU: tap-by-tap masked lane-shift FMAs
    # (only one shifted copy live at a time).
    acc = p["bdw"]
    kdw = p["kdw"]                                   # (9, C, 1)
    for ti, (dh, dw) in enumerate(_OFFSETS_3X3):
        acc = acc + _masked_tap(t, mask, ti, dh, dw, width) * kdw[ti]
    d = _silu(acc)
    # SE block: GAP -> FC -> ReLU -> FC -> sigmoid -> per-channel scale (no transposes:
    # contractions run along sublanes/lanes via broadcast-multiply + single-axis reduce).
    pooled = jnp.mean(d, axis=1, keepdims=True)                           # (C, 1)
    s = jnp.sum(p["se_w1"] * pooled, axis=0, keepdims=True) + p["se_b1"]  # (1, Cr)
    s = jnp.maximum(s, 0.0)
    s = jnp.sum(p["se_w2"] * s, axis=1, keepdims=True) + p["se_b2"]       # (C, 1)
    d = d * _sigmoid(s)
    # conv3 / conv4 (1x1, BN folded) + SiLU.
    d = _silu(jnp.dot(p["w3"], d, preferred_element_type=f32) + p["b3"])
    x1 = _silu(jnp.dot(p["w4"], x1, preferred_element_type=f32) + p["b4"])
    # conv5 over cat([d, x1]) (1x1, BN2 folded) + SiLU; concat again folded into weights.
    return _silu(jnp.dot(p["w5a"], d, preferred_element_type=f32)
                 + jnp.dot(p["w5b"], x1, preferred_element_type=f32) + p["b5"])


# ------------------------------------------------------------------
# Single fused Pallas kernel: MBConv1 -> MBConv2 -> conv3x3 + residual
# ------------------------------------------------------------------
def _feature_refine_kernel(x1u_ref, x2_ref, x3p_ref, mask_ref, *refs, width):
    n_mb = len(_MB_PARAM_NAMES)
    mb1_refs = refs[:n_mb]
    mb2_refs = refs[n_mb:2 * n_mb]
    w9_ref = refs[2 * n_mb]
    c1_ref, h2_ref = refs[2 * n_mb + 1], refs[2 * n_mb + 2]

    mask = mask_ref[...]
    p1 = {k: r[...] for k, r in zip(_MB_PARAM_NAMES, mb1_refs)}
    p2 = {k: r[...] for k, r in zip(_MB_PARAM_NAMES, mb2_refs)}

    x2 = x2_ref[0]
    # c1 = MBConv1(cat([upsample(x1), x2])); intermediate never leaves VMEM/vregs.
    c_mid = _mbconv_body(x1u_ref[0], x2, mask, p1, width)
    # c1 = MBConv2(cat([c1, maxpool(x3)]))
    c1 = _mbconv_body(c_mid, x3p_ref[0], mask, p2, width)
    c1_ref[0] = c1

    # h2 = conv3x3(c1) + x2: 9 accumulated (C, C) @ (C, M) matmuls over masked lane shifts
    # (no im2col materialization; XLU shifts overlap MXU matmuls).
    w9 = w9_ref[...]                                 # (9, C, C)
    acc = x2
    for ti, (dh, dw) in enumerate(_OFFSETS_3X3):
        tap = _masked_tap(c1, mask, ti, dh, dw, width)
        acc = acc + jnp.dot(w9[ti], tap, preferred_element_type=jnp.float32)
    h2_ref[0] = acc


# ------------------------------------------------------------------
# pallas_call wrapper
# ------------------------------------------------------------------
def _act_spec(c, m):
    return pl.BlockSpec((1, c, m), lambda i: (i, 0, 0))


def _full_spec(arr):
    nd = arr.ndim
    return pl.BlockSpec(arr.shape, lambda i: (0,) * nd)


def _refine_trunk(x1u, x2f, x3p, params, mask, width):
    """Fused trunk: (c1, h2) both (N, F, M), channel-major flattened activations."""
    n, f, m = x2f.shape
    weights = ([params["mb1"][k] for k in _MB_PARAM_NAMES]
               + [params["mb2"][k] for k in _MB_PARAM_NAMES]
               + [params["conv1_w9"]])
    return pl.pallas_call(
        functools.partial(_feature_refine_kernel, width=width),
        out_shape=(jax.ShapeDtypeStruct((n, f, m), jnp.float32),
                   jax.ShapeDtypeStruct((n, f, m), jnp.float32)),
        grid=(n,),
        in_specs=[_act_spec(f, m), _act_spec(f, m), _act_spec(f, m), _full_spec(mask)]
        + [_full_spec(x) for x in weights],
        out_specs=(_act_spec(f, m), _act_spec(f, m)),
        compiler_params=pltpu.CompilerParams(dimension_semantics=("parallel",)),
    )(x1u, x2f, x3p, mask, *weights)


# ------------------------------------------------------------------
# Glue ops (tiny, memory-bound): plain jnp, fused by XLA
# ------------------------------------------------------------------
def _upsample2(x):   # NCHW nearest x2  (nn.Upsample(scale_factor=2))
    return jnp.repeat(jnp.repeat(x, 2, axis=2), 2, axis=3)


def _maxpool2(x):    # NCHW MaxPool2d(kernel_size=2, stride=2)
    n, c, h, w = x.shape
    return jnp.max(x.reshape(n, c, h // 2, 2, w // 2, 2), axis=(3, 5))


# ------------------------------------------------------------------
# FeatureRefine forward
# ------------------------------------------------------------------
def feature_refine_forward(xs, params):
    x1, x2, x3, x4 = xs                       # NCHW pyramid: S, 2S, 4S, S/2
    n, f, h, w = x2.shape
    m = h * w
    mask = _stencil_mask(h, w)
    x1u = _upsample2(x1).reshape(n, f, m)
    x3p = _maxpool2(x3).reshape(n, f, m)
    x2f = x2.reshape(n, f, m)
    c1, h2 = _refine_trunk(x1u, x2f, x3p, params, mask, w)
    c1 = c1.reshape(n, f, h, w)
    h2 = h2.reshape(n, f, h, w)
    # Remaining heads: residual adds / resampling are pure glue -> plain jnp (XLA fuses).
    h1 = _upsample2(c1) + x3
    h3_1 = _maxpool2(c1)
    h3 = h3_1 + x1
    h4 = _maxpool2(h3_1) + x4
    return h1, h2, h3, h4


# ------------------------------------------------------------------
# Deterministic parameter initialization (kernel-ready layout, BN folded)
# ------------------------------------------------------------------
def _randn(key, tag, shape, scale=0.05):
    return scale * jax.random.normal(jax.random.fold_in(key, tag), shape, jnp.float32)


def _fold_bn(gamma, beta, mean, var):
    inv = gamma / jnp.sqrt(var + _BN_EPS)
    return inv, beta - mean * inv


def init_mbconv_params(key, in_feature, out_feature, r=6):
    c = in_feature // 2
    cr = max(c // r, 1)
    # Shared BatchNorm for conv1/conv2/conv3/conv4 outputs (as in the reference), plus bn2.
    inv, bias = _fold_bn(1.0 + _randn(key, 20, (c,), 0.1), _randn(key, 21, (c,), 0.1),
                         _randn(key, 22, (c,), 0.1), 1.0 + jnp.abs(_randn(key, 23, (c,), 0.1)))
    inv2, bias2 = _fold_bn(1.0 + _randn(key, 24, (out_feature,), 0.1),
                           _randn(key, 25, (out_feature,), 0.1),
                           _randn(key, 26, (out_feature,), 0.1),
                           1.0 + jnp.abs(_randn(key, 27, (out_feature,), 0.1)))
    # 1x1 conv weights stored transposed (Cout, Cin); BN scale folded into output rows.
    w1 = _randn(key, 1, (c, in_feature)) * inv[:, None]
    w3 = _randn(key, 2, (c, c)) * inv[:, None]
    w4 = _randn(key, 3, (c, c)) * inv[:, None]
    w5 = _randn(key, 4, (out_feature, in_feature)) * inv2[:, None]
    # Depthwise 3x3 taps: kdw[t, ch, 0] == torch_w[ch, 0, t // 3, t % 3]; BN scale folded.
    kdw = (_randn(key, 5, (c, 9)) * inv[:, None]).T.reshape(9, c, 1)
    return dict(
        w1a=w1[:, :c], w1b=w1[:, c:], b1=bias[:, None],
        kdw=kdw, bdw=bias[:, None],
        se_w1=_randn(key, 6, (c, cr)),      # == fc1.weight.T   (fc1: Linear(c, cr))
        se_b1=_randn(key, 7, (1, cr)),
        se_w2=_randn(key, 8, (c, cr)),      # == fc2.weight     (fc2: Linear(cr, c))
        se_b2=_randn(key, 9, (c, 1)),
        w3=w3, b3=bias[:, None],
        w4=w4, b4=bias[:, None],
        w5a=w5[:, :c], w5b=w5[:, c:], b5=bias2[:, None],
    )


def init_feature_refine_params(key, feature):
    return dict(
        mb1=init_mbconv_params(jax.random.fold_in(key, 101), feature * 2, feature),
        mb2=init_mbconv_params(jax.random.fold_in(key, 102), feature * 2, feature),
        # 3x3 head conv, per-tap layout: conv1_w9[t, o, ci] == torch_w[o, ci, t // 3, t % 3].
        conv1_w9=_randn(jax.random.fold_in(key, 103), 0, (9, feature, feature)),
    )


if __name__ == "__main__":
    _ROLL_IS_NUMPY_CONVENTION = _detect_roll_convention()

    feature = 16
    N, S = 2, 8
    key = jax.random.PRNGKey(0)
    params = init_feature_refine_params(key, feature)

    k1, k2, k3, k4 = jax.random.split(key, 4)
    # NCHW pyramid matching the PyTorch reference: S, 2S, 4S, S/2.
    x1 = jax.random.normal(k1, (N, feature, S, S), jnp.float32)
    x2 = jax.random.normal(k2, (N, feature, 2 * S, 2 * S), jnp.float32)
    x3 = jax.random.normal(k3, (N, feature, 4 * S, 4 * S), jnp.float32)
    x4 = jax.random.normal(k4, (N, feature, S // 2, S // 2), jnp.float32)

    h1, h2, h3, h4 = jax.jit(feature_refine_forward)((x1, x2, x3, x4), params)
    jax.block_until_ready((h1, h2, h3, h4))

    assert h1.shape == x3.shape and h2.shape == x2.shape
    assert h3.shape == x1.shape and h4.shape == x4.shape
    print("KERNEL_OK")
</pallas_src>

<mosaic_0001>
module attributes {stable_mosaic.version = 11 : i64} {
  func.func @k(%arg0: memref<8x128xf32, #tpu.memory_space<vmem>>, %arg1: memref<8x128xf32, #tpu.memory_space<vmem>>) attributes {dimension_semantics = [], scalar_prefetch = 0 : i64, scratch_operands = 0 : i64, tpu.core_type = #tpu.core_type<tc>} {
    %c0 = arith.constant 0 : index
    %c0_0 = arith.constant 0 : index
    %0 = vector.load %arg0[%c0, %c0_0] : memref<8x128xf32, #tpu.memory_space<vmem>>, vector<8x128xf32>
    %c1_i32 = arith.constant 1 : i32
    %1 = tpu.dynamic_rotate %0 by %c1_i32 dim 1 : vector<8x128xf32>, i32 -> vector<8x128xf32>
    %c0_1 = arith.constant 0 : index
    %c0_2 = arith.constant 0 : index
    %2 = vector.load %arg1[%c0_1, %c0_2] : memref<8x128xf32, #tpu.memory_space<vmem>>, vector<8x128xf32>
    tpu.vector_store %arg1[%c0_1, %c0_2], %1 {strides = array<i32>} : memref<8x128xf32, #tpu.memory_space<vmem>>, vector<8x128xf32>,
    return
  }
}

</mosaic_0001>

<llo_original>
// kernel: tpu_custom_call.1
$region0: #{tpu_custom_call.1}
  #allocation0 [shape = 'u32[]', space=smem, size = 0x4, offset = 0x4, fixed_abs, tag = 'smem constant byte address 0x4 - core index']
  #allocation1 [shape = 'u32[144,128]{1,0:T(1,128)}', space=vmem, size = 0x12000, scoped, tag = 'internal scratch']
  %s0 = inlined_call_operand.hbm [shape: f32[8,128], index: 0, kind: input, shape index: {}]
  %s1 = inlined_call_operand.hbm [shape: f32[8,128], index: 1, kind: output, shape index: {}]
  %s2 = sld [smem:[#allocation0]]
  $region18: #{tpu_custom_call.1} parent=0
    _
  %s4 = ssub.s32 1, %s2
  %s5 = scalar_select 0, %s4, %s2
  $region1: #{tpu_custom_call.1} parent=0
    #allocation2 [shape = 'u8[4096]{0}', space=vmem, size = 0x1000, scoped, tag = 'input window, operand 0, single buffered']
    #allocation3 [shape = 's32[1]{0}', space=sflag, size = 0x4, scoped, tag = 'scoped memory for tpu_custom_call.1']
    #allocation4 [shape = 's32[1]{0}', space=sflag, size = 0x4, scoped, tag = 'scoped memory for tpu_custom_call.1']
    #allocation5 [shape = 'u8[4096]{0}', space=vmem, size = 0x1000, scoped, tag = 'output window, operand 0, single buffered']
    %6 = vsyncpa [#allocation3], 0
    %7 = vsyncpa [#allocation4], 0
    // Predicated region
    $region2: #{tpu_custom_call.1} parent=1 // pred_check
      _
    $region3: #{tpu_custom_call.1} parent=1 // pred_check_branch
      %9 = sbr.rel (0) target = $region5
    $region4: #{tpu_custom_call.1} parent=1 // pred_region
      %s11 = ssub.s32 128, 128
      %12 = vsyncadd [#allocation3], %s11
      %s14 = sshll.u32 [#allocation2], 4
      %s15 = int_to_ptr.vmem [resolvable:$true] %s14
      %17 = dma.hbm_to_vmem [thread:$0]  %s0, 128, %s15, [#allocation3]
    $region5: #{tpu_custom_call.1} parent=1 // pred_fallthru
      _
    // Predicated region
    $region6: #{tpu_custom_call.1} parent=1 // pred_check
      _
    $region7: #{tpu_custom_call.1} parent=1 // pred_check_branch
      %19 = sbr.rel (0) target = $region9
    $region8: #{tpu_custom_call.1} parent=1 // pred_region
      %20 = dma.done [#allocation3], 128
    $region9: #{tpu_custom_call.1} parent=1 // pred_fallthru
      _
    %v21 = vld [vmem:[#allocation2] sm:$0xff]
    %22 = vrot.lane.b32.xlu0 %v21, 1
    %v23 = vpop.permute.xlu0 %22
    %24 = vst [vmem:[#allocation5] sm:$0xff] %v23
    // Predicated region
    $region10: #{tpu_custom_call.1} parent=1 // pred_check
      _
    $region11: #{tpu_custom_call.1} parent=1 // pred_check_branch
      %26 = sbr.rel (0) target = $region13
    $region12: #{tpu_custom_call.1} parent=1 // pred_region
      %s28 = ssub.s32 128, 128
      %29 = vsyncadd [#allocation4], %s28
      %s31 = sshll.u32 [#allocation5], 4
      %s32 = int_to_ptr.vmem [resolvable:$true] %s31
      %34 = dma.vmem_to_hbm [thread:$0]  %s32, 128, %s1, [#allocation4]
    $region13: #{tpu_custom_call.1} parent=1 // pred_fallthru
      _
    // Predicated region
    $region14: #{tpu_custom_call.1} parent=1 // pred_check
      _
    $region15: #{tpu_custom_call.1} parent=1 // pred_check_branch
      %36 = sbr.rel (0) target = $region17
    $region16: #{tpu_custom_call.1} parent=1 // pred_region
      %37 = dma.done [#allocation4], 128
    $region17: #{tpu_custom_call.1} parent=1 // pred_fallthru
      _
    %38 = vsyncpa [#allocation3], 1
    %39 = vsyncpa [#allocation4], 1

</llo_original>
